<compile_context>
chip_gen: v7x
topology: tpu7x:2x2x1
jax: 0.10.0
libtpu: 0.0.40
codegen_flags: <defaults>
</compile_context>

<pallas_src>
import functools

import jax
import jax.numpy as jnp
from jax.experimental import pallas as pl
from jax.experimental.pallas import tpu as pltpu

LANE = 128


def _round_up(x, m):
    return ((x + m - 1) // m) * m


def _pad_to(x, shape):
    return jnp.pad(x, [(0, s - d) for d, s in zip(x.shape, shape)])


def _fused_gcn_kernel(a_ref, x_ref, w0_ref, b0_ref, ws_ref, bs_ref, o_ref,
                      h_a, h_b, *, n_stacked: int, rank1_first: bool):
    """Whole GCN stack in one kernel.

    a_ref : (N, N)        normalized adjacency (f32 or bf16)
    x_ref : (N, F0[_pad]) input node features
    w0_ref: first-layer weight ((1, Fp) if rank1_first else (F0_pad, Fp), f32 / bf16)
    b0_ref: (1, Fp) f32
    ws_ref: (L-1, Fp, Fp) stacked hidden+final weights
    bs_ref: (L-1, 1, Fp)  stacked hidden+final biases (f32)
    o_ref : (N, Fp) f32
    h_a,h_b: (N, Fp) f32 VMEM ping-pong buffers for the hidden state.
    """
    a = a_ref[...]

    # ---- layer 0 (conv_start) ----
    if rank1_first:
        # F_in == 1:  A @ (x @ w_row) == (A @ x) * w_row  -> MXU for A@x, VPU for the rest.
        ah = jnp.dot(a, x_ref[...], preferred_element_type=jnp.float32)      # (N, 1) f32
        h = ah * w0_ref[...] + b0_ref[...]                                   # (N, Fp) f32
    else:
        xw = jnp.dot(x_ref[...], w0_ref[...], preferred_element_type=jnp.float32)
        h = jnp.dot(a, xw.astype(a.dtype), preferred_element_type=jnp.float32) + b0_ref[...]
    h_a[...] = jnp.maximum(h, 0.0)                                           # relu after conv_start

    # ---- hidden layers + conv_final (ping-pong H between VMEM buffers) ----
    # With padded F_in == F_out the (H@W) vs (A@H) association is cost-neutral, so the
    # standard order is used; f32 accumulation on the MXU, f32 epilogue on the VPU.
    bufs = (h_a, h_b)
    for i in range(n_stacked):
        src = bufs[i % 2]
        hw = jnp.dot(src[...].astype(a.dtype), ws_ref[i],
                     preferred_element_type=jnp.float32)
        out = jnp.dot(a, hw.astype(a.dtype),
                      preferred_element_type=jnp.float32) + bs_ref[i]
        if i < n_stacked - 1:
            bufs[(i + 1) % 2][...] = jnp.maximum(out, 0.0)                   # relu on hidden layers
        else:
            o_ref[...] = out.astype(o_ref.dtype)                             # no relu after conv_final


def build_normalized_adjacency(src, dst, num_nodes):
    """Dense D^{-1/2}(A + I)D^{-1/2} with self loops (dgl.add_self_loop + norm='both').

    Note: duplicate (src, dst) edges accumulate weight > 1, matching DGL multigraph behavior.
    """
    a = jnp.zeros((num_nodes, num_nodes), jnp.float32)
    a = a.at[dst, src].add(1.0)                        # message src -> dst
    a = a + jnp.eye(num_nodes, dtype=jnp.float32)      # self loops
    deg = jnp.sum(a, axis=1)
    d_inv_sqrt = jnp.where(deg > 0, 1.0 / jnp.sqrt(deg), 0.0)
    return a * d_inv_sqrt[:, None] * d_inv_sqrt[None, :]


def init_params(key, n_layers, original_features_num, in_features, out_features):
    """Deterministic (Glorot-style) init matching GraphConv parameter shapes."""
    dims = [(original_features_num, in_features)]
    dims += [(in_features, in_features)] * (n_layers - 2)
    dims += [(in_features, out_features)]
    params = []
    for i, (fin, fout) in enumerate(dims):
        k = jax.random.fold_in(key, i)
        scale = jnp.sqrt(6.0 / (fin + fout))
        w = jax.random.uniform(k, (fin, fout), jnp.float32, -scale, scale)
        b = jnp.zeros((1, fout), jnp.float32)
        params.append((w, b))
    return params


def base_gcn_forward(a_hat, node_feat, params, *, compute_dtype=jnp.float32):
    """Full BaseGCN forward in one fused Pallas call. Returns shape (1, N, out_features)."""
    assert len(params) >= 2, "need at least conv_start and conv_final"
    n = a_hat.shape[0]
    f0 = node_feat.shape[1]
    out_features = params[-1][0].shape[1]

    # Lane-dense padded feature width shared by all hidden/output tiles.
    f_pad = _round_up(max(max(w.shape[1] for w, _ in params), 1), LANE)
    rank1_first = (f0 == 1)

    a_c = a_hat.astype(compute_dtype)
    if rank1_first:
        x_c = node_feat.astype(compute_dtype)                      # (N, 1)
        w0_p = _pad_to(params[0][0], (1, f_pad))                   # f32 (VPU epilogue path)
    else:
        f0_pad = _round_up(f0, LANE)
        x_c = _pad_to(node_feat, (n, f0_pad)).astype(compute_dtype)
        w0_p = _pad_to(params[0][0], (f0_pad, f_pad)).astype(compute_dtype)
    b0_p = _pad_to(params[0][1], (1, f_pad))                       # f32
    ws = jnp.stack([_pad_to(w, (f_pad, f_pad)) for w, _ in params[1:]]).astype(compute_dtype)
    bs = jnp.stack([_pad_to(b, (1, f_pad)) for _, b in params[1:]])  # f32

    n_stacked = len(params) - 1
    kernel = functools.partial(_fused_gcn_kernel,
                               n_stacked=n_stacked, rank1_first=rank1_first)

    # Advisory cost hint for XLA's scheduler around the custom call.
    if rank1_first:
        flops_l0 = 2 * n * n + 2 * n * f_pad
    else:
        flops_l0 = 2 * n * x_c.shape[1] * f_pad + 2 * n * n * f_pad
    flops = flops_l0 + n_stacked * (2 * n * f_pad * f_pad + 2 * n * n * f_pad)
    operands = (a_c, x_c, w0_p, b0_p, ws, bs)
    bytes_accessed = sum(int(o.size) * o.dtype.itemsize for o in operands) + n * f_pad * 4

    vmem = pl.BlockSpec(memory_space=pltpu.MemorySpace.VMEM)
    out_pad = pl.pallas_call(
        kernel,
        out_shape=jax.ShapeDtypeStruct((n, f_pad), jnp.float32),
        in_specs=[vmem] * len(operands),
        out_specs=vmem,
        scratch_shapes=[pltpu.VMEM((n, f_pad), jnp.float32),
                        pltpu.VMEM((n, f_pad), jnp.float32)],
        cost_estimate=pl.CostEstimate(flops=int(flops), transcendentals=0,
                                      bytes_accessed=int(bytes_accessed)),
    )(*operands)

    return out_pad[None, :, :out_features]                          # unsqueeze(0) + drop padding


def _reference_forward(a_hat, node_feat, params):
    h = node_feat
    n_layers = len(params)
    for i, (w, b) in enumerate(params):
        h = a_hat @ (h @ w) + b
        if i < n_layers - 1:
            h = jnp.maximum(h, 0.0)
    return h[None, ...]


if __name__ == "__main__":
    key = jax.random.PRNGKey(0)

    # Small synthetic graph: N nodes, ring edges in both directions.
    N = 32
    n_layers = 4                 # conv_start + 2 hidden + conv_final
    original_features_num = 1
    in_features = 32
    out_features = 16

    idx = jnp.arange(N)
    src = jnp.concatenate([idx, (idx + 1) % N])
    dst = jnp.concatenate([(idx + 1) % N, idx])
    a_hat = build_normalized_adjacency(src, dst, N)

    k_feat, k_param = jax.random.split(key)
    node_feat = jax.random.normal(k_feat, (N, original_features_num), jnp.float32)
    params = init_params(k_param, n_layers, original_features_num,
                         in_features, out_features)

    ref = _reference_forward(a_hat, node_feat, params)

    # f32 path: exact parity with the reference.
    out = jax.block_until_ready(
        base_gcn_forward(a_hat, node_feat, params, compute_dtype=jnp.float32))
    assert out.shape == (1, N, out_features), out.shape
    assert jnp.allclose(out, ref, atol=2e-4, rtol=2e-4), "f32 mismatch vs JAX reference"

    # bf16 operands (f32 accumulation / epilogue): v6e/v7x-friendly variant.
    out_bf16 = jax.block_until_ready(
        base_gcn_forward(a_hat, node_feat, params, compute_dtype=jnp.bfloat16))
    assert out_bf16.shape == (1, N, out_features), out_bf16.shape
    assert jnp.allclose(out_bf16, ref, atol=5e-2, rtol=5e-2), "bf16 mismatch vs JAX reference"

    print("KERNEL_OK")
</pallas_src>

<mosaic_0001>
module attributes {stable_mosaic.version = 11 : i64} {
  func.func @_fused_gcn_kernel(%arg0: memref<32x32xf32, #tpu.memory_space<vmem>>, %arg1: memref<32x1xf32, #tpu.memory_space<vmem>>, %arg2: memref<1x128xf32, #tpu.memory_space<vmem>>, %arg3: memref<1x128xf32, #tpu.memory_space<vmem>>, %arg4: memref<3x128x128xf32, #tpu.memory_space<vmem>>, %arg5: memref<3x1x128xf32, #tpu.memory_space<vmem>>, %arg6: memref<32x128xf32, #tpu.memory_space<vmem>>, %arg7: memref<32x128xf32, #tpu.memory_space<vmem>>, %arg8: memref<32x128xf32, #tpu.memory_space<vmem>>) attributes {dimension_semantics = [], scalar_prefetch = 0 : i64, scratch_operands = 2 : i64, tpu.core_type = #tpu.core_type<tc>} {
    %c0 = arith.constant 0 : index
    %c0_0 = arith.constant 0 : index
    %0 = vector.load %arg0[%c0, %c0_0] : memref<32x32xf32, #tpu.memory_space<vmem>>, vector<32x32xf32>
    %c0_1 = arith.constant 0 : index
    %c0_2 = arith.constant 0 : index
    %1 = vector.load %arg1[%c0_1, %c0_2] : memref<32x1xf32, #tpu.memory_space<vmem>>, vector<32x1xf32>
    %cst = arith.constant dense<0.000000e+00> : vector<32x1xf32>
    %2 = tpu.matmul %0, %1, %cst {dimension_numbers = #tpu.dot_dimension_numbers<[1], [0], [0], [1], [0, 0, 1, 1], [], []>} : vector<32x32xf32>, vector<32x1xf32>, vector<32x1xf32> -> vector<32x1xf32>
    %c0_3 = arith.constant 0 : index
    %c0_4 = arith.constant 0 : index
    %3 = vector.load %arg2[%c0_3, %c0_4] : memref<1x128xf32, #tpu.memory_space<vmem>>, vector<1x128xf32>
    %4 = vector.broadcast %2 : vector<32x1xf32> to vector<32x128xf32>
    %5 = vector.broadcast %3 : vector<1x128xf32> to vector<32x128xf32>
    %6 = arith.mulf %4, %5 : vector<32x128xf32>
    %c0_5 = arith.constant 0 : index
    %c0_6 = arith.constant 0 : index
    %7 = vector.load %arg3[%c0_5, %c0_6] : memref<1x128xf32, #tpu.memory_space<vmem>>, vector<1x128xf32>
    %8 = vector.broadcast %7 : vector<1x128xf32> to vector<32x128xf32>
    %9 = arith.addf %6, %8 : vector<32x128xf32>
    %cst_7 = arith.constant 0.000000e+00 : f32
    %10 = vector.broadcast %cst_7 : f32 to vector<32x128xf32>
    %11 = arith.maximumf %9, %10 : vector<32x128xf32>
    %c0_8 = arith.constant 0 : index
    %c0_9 = arith.constant 0 : index
    %12 = vector.load %arg7[%c0_8, %c0_9] : memref<32x128xf32, #tpu.memory_space<vmem>>, vector<32x128xf32>
    tpu.vector_store %arg7[%c0_8, %c0_9], %11 {strides = array<i32>} : memref<32x128xf32, #tpu.memory_space<vmem>>, vector<32x128xf32>,
    %c0_10 = arith.constant 0 : index
    %c0_11 = arith.constant 0 : index
    %13 = vector.load %arg7[%c0_10, %c0_11] : memref<32x128xf32, #tpu.memory_space<vmem>>, vector<32x128xf32>
    %c0_12 = arith.constant 0 : index
    %c0_13 = arith.constant 0 : index
    %c0_14 = arith.constant 0 : index
    %14 = vector.load %arg4[%c0_12, %c0_13, %c0_14] : memref<3x128x128xf32, #tpu.memory_space<vmem>>, vector<1x128x128xf32>
    %15 = vector.shape_cast %14 : vector<1x128x128xf32> to vector<128x128xf32>
    %cst_15 = arith.constant dense<0.000000e+00> : vector<32x128xf32>
    %16 = tpu.matmul %13, %15, %cst_15 {dimension_numbers = #tpu.dot_dimension_numbers<[1], [0], [0], [1], [0, 0, 1, 1], [], []>} : vector<32x128xf32>, vector<128x128xf32>, vector<32x128xf32> -> vector<32x128xf32>
    %cst_16 = arith.constant dense<0.000000e+00> : vector<32x128xf32>
    %17 = tpu.matmul %0, %16, %cst_16 {dimension_numbers = #tpu.dot_dimension_numbers<[1], [0], [0], [1], [0, 0, 1, 1], [], []>} : vector<32x32xf32>, vector<32x128xf32>, vector<32x128xf32> -> vector<32x128xf32>
    %c0_17 = arith.constant 0 : index
    %c0_18 = arith.constant 0 : index
    %c0_19 = arith.constant 0 : index
    %18 = vector.load %arg5[%c0_17, %c0_18, %c0_19] : memref<3x1x128xf32, #tpu.memory_space<vmem>>, vector<1x1x128xf32>
    %19 = vector.shape_cast %18 : vector<1x1x128xf32> to vector<1x128xf32>
    %20 = vector.broadcast %19 : vector<1x128xf32> to vector<32x128xf32>
    %21 = arith.addf %17, %20 : vector<32x128xf32>
    %cst_20 = arith.constant 0.000000e+00 : f32
    %22 = vector.broadcast %cst_20 : f32 to vector<32x128xf32>
    %23 = arith.maximumf %21, %22 : vector<32x128xf32>
    %c0_21 = arith.constant 0 : index
    %c0_22 = arith.constant 0 : index
    %24 = vector.load %arg8[%c0_21, %c0_22] : memref<32x128xf32, #tpu.memory_space<vmem>>, vector<32x128xf32>
    tpu.vector_store %arg8[%c0_21, %c0_22], %23 {strides = array<i32>} : memref<32x128xf32, #tpu.memory_space<vmem>>, vector<32x128xf32>,
    %c0_23 = arith.constant 0 : index
    %c0_24 = arith.constant 0 : index
    %25 = vector.load %arg8[%c0_23, %c0_24] : memref<32x128xf32, #tpu.memory_space<vmem>>, vector<32x128xf32>
    %c1 = arith.constant 1 : index
    %c0_25 = arith.constant 0 : index
    %c0_26 = arith.constant 0 : index
    %26 = vector.load %arg4[%c1, %c0_25, %c0_26] : memref<3x128x128xf32, #tpu.memory_space<vmem>>, vector<1x128x128xf32>
    %27 = vector.shape_cast %26 : vector<1x128x128xf32> to vector<128x128xf32>
    %cst_27 = arith.constant dense<0.000000e+00> : vector<32x128xf32>
    %28 = tpu.matmul %25, %27, %cst_27 {dimension_numbers = #tpu.dot_dimension_numbers<[1], [0], [0], [1], [0, 0, 1, 1], [], []>} : vector<32x128xf32>, vector<128x128xf32>, vector<32x128xf32> -> vector<32x128xf32>
    %cst_28 = arith.constant dense<0.000000e+00> : vector<32x128xf32>
    %29 = tpu.matmul %0, %28, %cst_28 {dimension_numbers = #tpu.dot_dimension_numbers<[1], [0], [0], [1], [0, 0, 1, 1], [], []>} : vector<32x32xf32>, vector<32x128xf32>, vector<32x128xf32> -> vector<32x128xf32>
    %c1_29 = arith.constant 1 : index
    %c0_30 = arith.constant 0 : index
    %c0_31 = arith.constant 0 : index
    %30 = vector.load %arg5[%c1_29, %c0_30, %c0_31] : memref<3x1x128xf32, #tpu.memory_space<vmem>>, vector<1x1x128xf32>
    %31 = vector.shape_cast %30 : vector<1x1x128xf32> to vector<1x128xf32>
    %32 = vector.broadcast %31 : vector<1x128xf32> to vector<32x128xf32>
    %33 = arith.addf %29, %32 : vector<32x128xf32>
    %cst_32 = arith.constant 0.000000e+00 : f32
    %34 = vector.broadcast %cst_32 : f32 to vector<32x128xf32>
    %35 = arith.maximumf %33, %34 : vector<32x128xf32>
    %c0_33 = arith.constant 0 : index
    %c0_34 = arith.constant 0 : index
    %36 = vector.load %arg7[%c0_33, %c0_34] : memref<32x128xf32, #tpu.memory_space<vmem>>, vector<32x128xf32>
    tpu.vector_store %arg7[%c0_33, %c0_34], %35 {strides = array<i32>} : memref<32x128xf32, #tpu.memory_space<vmem>>, vector<32x128xf32>,
    %c0_35 = arith.constant 0 : index
    %c0_36 = arith.constant 0 : index
    %37 = vector.load %arg7[%c0_35, %c0_36] : memref<32x128xf32, #tpu.memory_space<vmem>>, vector<32x128xf32>
    %c2 = arith.constant 2 : index
    %c0_37 = arith.constant 0 : index
    %c0_38 = arith.constant 0 : index
    %38 = vector.load %arg4[%c2, %c0_37, %c0_38] : memref<3x128x128xf32, #tpu.memory_space<vmem>>, vector<1x128x128xf32>
    %39 = vector.shape_cast %38 : vector<1x128x128xf32> to vector<128x128xf32>
    %cst_39 = arith.constant dense<0.000000e+00> : vector<32x128xf32>
    %40 = tpu.matmul %37, %39, %cst_39 {dimension_numbers = #tpu.dot_dimension_numbers<[1], [0], [0], [1], [0, 0, 1, 1], [], []>} : vector<32x128xf32>, vector<128x128xf32>, vector<32x128xf32> -> vector<32x128xf32>
    %cst_40 = arith.constant dense<0.000000e+00> : vector<32x128xf32>
    %41 = tpu.matmul %0, %40, %cst_40 {dimension_numbers = #tpu.dot_dimension_numbers<[1], [0], [0], [1], [0, 0, 1, 1], [], []>} : vector<32x32xf32>, vector<32x128xf32>, vector<32x128xf32> -> vector<32x128xf32>
    %c2_41 = arith.constant 2 : index
    %c0_42 = arith.constant 0 : index
    %c0_43 = arith.constant 0 : index
    %42 = vector.load %arg5[%c2_41, %c0_42, %c0_43] : memref<3x1x128xf32, #tpu.memory_space<vmem>>, vector<1x1x128xf32>
    %43 = vector.shape_cast %42 : vector<1x1x128xf32> to vector<1x128xf32>
    %44 = vector.broadcast %43 : vector<1x128xf32> to vector<32x128xf32>
    %45 = arith.addf %41, %44 : vector<32x128xf32>
    %c0_44 = arith.constant 0 : index
    %c0_45 = arith.constant 0 : index
    %46 = vector.load %arg6[%c0_44, %c0_45] : memref<32x128xf32, #tpu.memory_space<vmem>>, vector<32x128xf32>
    tpu.vector_store %arg6[%c0_44, %c0_45], %45 {strides = array<i32>} : memref<32x128xf32, #tpu.memory_space<vmem>>, vector<32x128xf32>,
    return
  }
}

</mosaic_0001>

<llo_original>
// kernel: tpu_custom_call.1
$region0: #{tpu_custom_call.1}
  #allocation0 [shape = 'u32[]', space=smem, size = 0x4, offset = 0x4, fixed_abs, tag = 'smem constant byte address 0x4 - core index']
  #allocation1 [shape = 'u32[144,128]{1,0:T(1,128)}', space=vmem, size = 0x12000, scoped, tag = 'internal scratch']
  #allocation2 [shape = 'f32[32,128]{1,0:T(8,128)}', space=vmem, size = 0x4000, scoped, tag = 'scratch operand']
  #allocation3 [shape = 'f32[32,128]{1,0:T(8,128)}', space=vmem, size = 0x4000, scoped, tag = 'scratch operand']
  %s0 = inlined_call_operand.vmem [shape: f32[32,32], index: 0, kind: input, shape index: {}]
  %s1 = inlined_call_operand.vmem [shape: f32[32,1], index: 1, kind: input, shape index: {}]
  %s2 = inlined_call_operand.vmem [shape: f32[1,128], index: 2, kind: input, shape index: {}]
  %s3 = inlined_call_operand.vmem [shape: f32[1,128], index: 3, kind: input, shape index: {}]
  %s4 = inlined_call_operand.hbm [shape: f32[3,128,128], index: 4, kind: input, shape index: {}]
  %s5 = inlined_call_operand.vmem [shape: f32[3,1,128], index: 5, kind: input, shape index: {}]
  %s6 = inlined_call_operand.hbm [shape: f32[32,128], index: 6, kind: output, shape index: {}]
  %s7 = sld [smem:[#allocation0]]
  $region38: #{tpu_custom_call.1} parent=0
    _
  %s9 = ssub.s32 1, %s7
  %s10 = scalar_select 0, %s9, %s7
  $region1: #{tpu_custom_call.1} parent=0
    #allocation4 [shape = 'u8[196608]{0}', space=vmem, size = 0x30000, scoped, tag = 'input window, operand 4, single buffered']
    #allocation5 [shape = 's32[1]{0}', space=sflag, size = 0x4, scoped, tag = 'scoped memory for tpu_custom_call.1']
    #allocation6 [shape = 's32[1]{0}', space=sflag, size = 0x4, scoped, tag = 'scoped memory for tpu_custom_call.1']
    #allocation7 [shape = 'u8[16384]{0}', space=vmem, size = 0x4000, scoped, tag = 'output window, operand 0, single buffered']
    %11 = vsyncpa [#allocation5], 0
    %12 = vsyncpa [#allocation6], 0
    // Predicated region
    $region2: #{tpu_custom_call.1} parent=1 // pred_check
      _
    $region3: #{tpu_custom_call.1} parent=1 // pred_check_branch
      %14 = sbr.rel (0) target = $region5
    $region4: #{tpu_custom_call.1} parent=1 // pred_region
      _
    $region5: #{tpu_custom_call.1} parent=1 // pred_fallthru
      _
    // Predicated region
    $region6: #{tpu_custom_call.1} parent=1 // pred_check
      _
    $region7: #{tpu_custom_call.1} parent=1 // pred_check_branch
      %16 = sbr.rel (0) target = $region9
    $region8: #{tpu_custom_call.1} parent=1 // pred_region
      _
    $region9: #{tpu_custom_call.1} parent=1 // pred_fallthru
      _
    // Predicated region
    $region10: #{tpu_custom_call.1} parent=1 // pred_check
      _
    $region11: #{tpu_custom_call.1} parent=1 // pred_check_branch
      %18 = sbr.rel (0) target = $region13
    $region12: #{tpu_custom_call.1} parent=1 // pred_region
      _
    $region13: #{tpu_custom_call.1} parent=1 // pred_fallthru
      _
    // Predicated region
    $region14: #{tpu_custom_call.1} parent=1 // pred_check
      _
    $region15: #{tpu_custom_call.1} parent=1 // pred_check_branch
      %20 = sbr.rel (0) target = $region17
    $region16: #{tpu_custom_call.1} parent=1 // pred_region
      _
    $region17: #{tpu_custom_call.1} parent=1 // pred_fallthru
      _
    // Predicated region
    $region18: #{tpu_custom_call.1} parent=1 // pred_check
      _
    $region19: #{tpu_custom_call.1} parent=1 // pred_check_branch
      %22 = sbr.rel (0) target = $region21
    $region20: #{tpu_custom_call.1} parent=1 // pred_region
      %s24 = ssub.s32 6144, 6144
      %25 = vsyncadd [#allocation5], %s24
      %s26 = sshll.u32 [#allocation4], 4
      %s27 = int_to_ptr.vmem [resolvable:$true] %s26
      %32 = dma.hbm_to_vmem [thread:$0]  %s4, 6144, %s27, [#allocation5], 128, 128, 8
    $region21: #{tpu_custom_call.1} parent=1 // pred_fallthru
      _
    // Predicated region
    $region22: #{tpu_custom_call.1} parent=1 // pred_check
      _
    $region23: #{tpu_custom_call.1} parent=1 // pred_check_branch
      %34 = sbr.rel (0) target = $region25
    $region24: #{tpu_custom_call.1} parent=1 // pred_region
      _
    $region25: #{tpu_custom_call.1} parent=1 // pred_fallthru
      _
    // Predicated region
    $region26: #{tpu_custom_call.1} parent=1 // pred_check
      _
    $region27: #{tpu_custom_call.1} parent=1 // pred_check_branch
      %36 = sbr.rel (0) target = $region29
    $region28: #{tpu_custom_call.1} parent=1 // pred_region
      %37 = dma.done [#allocation5], 6144
    $region29: #{tpu_custom_call.1} parent=1 // pred_fallthru
      _
    %v38 = vld [vmem:[%s0] sm:$0xff]
    %v39 = vld [vmem:[%s0 + $0x8] sm:$0xff]
    %v40 = vld [vmem:[%s0 + $0x10] sm:$0xff]
    %v41 = vld [vmem:[%s0 + $0x18] sm:$0xff]
    %v42 = vld [vmem:[%s1] sm:$0xff]
    %v43 = vld [vmem:[%s1 + $0x8] sm:$0xff]
    %v44 = vld [vmem:[%s1 + $0x10] sm:$0xff]
    %v45 = vld [vmem:[%s1 + $0x18] sm:$0xff]
    %vm46 = vcmask 261120
    %v48 = vsel %vm46, %v38, 0
    %v51 = vsel %vm46, %v39, 0
    %v54 = vsel %vm46, %v40, 0
    %v57 = vsel %vm46, %v41, 0
    %59 = vmatprep.subr.mxu0 0.0
    %60 = vmatpush1.msra.mxu0 %v42
    %61 = vmatprep.subr.mxu0 0.0
    %62 = vmatpush1.msra.mxu0 %v43
    %63 = vmatprep.subr.mxu0 0.0
    %64 = vmatpush1.msra.mxu0 %v44
    %65 = vmatprep.subr.mxu0 0.0
    %66 = vmatpush1.msra.mxu0 %v45
    %67 = vmatprep.subr.mxu0 0.0
    %68 = vmatpush1.msra.mxu0 0.0
    %69 = vmatprep.subr.mxu0 0.0
    %70 = vmatpush1.msra.mxu0 0.0
    %71 = vmatprep.subr.mxu0 0.0
    %72 = vmatpush1.msra.mxu0 0.0
    %73 = vmatprep.subr.mxu0 0.0
    %74 = vmatpush1.msra.mxu0 0.0
    %75 = vmatprep.subr.mxu0 0.0
    %76 = vmatpush1.msra.mxu0 0.0
    %77 = vmatprep.subr.mxu0 0.0
    %78 = vmatpush1.msra.mxu0 0.0
    %79 = vmatprep.subr.mxu0 0.0
    %80 = vmatpush1.msra.mxu0 0.0
    %81 = vmatprep.subr.mxu0 0.0
    %82 = vmatpush1.msra.mxu0 0.0
    %83 = vmatprep.subr.mxu0 0.0
    %84 = vmatpush1.msra.mxu0 0.0
    %85 = vmatprep.subr.mxu0 0.0
    %86 = vmatpush1.msra.mxu0 0.0
    %87 = vmatprep.subr.mxu0 0.0
    %88 = vmatpush1.msra.mxu0 0.0
    %89 = vmatprep.subr.mxu0 0.0
    %90 = vmatpush1.msra.mxu0 0.0
    %91 = vmatprep.subr.mxu0 0.0
    %92 = vmatpush1.msra.mxu0 0.0
    %93 = vmatprep.subr.mxu0 0.0
    %94 = vmatpush1.msra.mxu0 0.0
    %95 = vmatprep.subr.mxu0 0.0
    %96 = vmatpush1.msra.mxu0 0.0
    %97 = vmatprep.subr.mxu0 0.0
    %98 = vmatpush1.msra.mxu0 0.0
    %99 = vmatprep.subr.mxu0 0.0
    %100 = vmatpush1.msra.mxu0 0.0
    %101 = vmatprep.subr.mxu0 0.0
    %102 = vmatpush1.msra.mxu0 0.0
    %103 = vmatprep.subr.mxu0 0.0
    %104 = vmatpush1.msra.mxu0 0.0
    %105 = vmatprep.subr.mxu0 0.0
    %106 = vmatpush1.msra.mxu0 0.0
    %107 = vmatprep.subr.mxu0 0.0
    %108 = vmatpush1.msra.mxu0 0.0
    %109 = vmatprep.subr.mxu0 0.0
    %110 = vmatpush1.msra.mxu0 0.0
    %111 = vmatprep.subr.mxu0 0.0
    %112 = vmatpush1.msra.mxu0 0.0
    %113 = vmatprep.subr.mxu0 0.0
    %114 = vmatpush1.msra.mxu0 0.0
    %115 = vmatprep.subr.mxu0 0.0
    %116 = vmatpush1.msra.mxu0 0.0
    %117 = vmatprep.subr.mxu0 0.0
    %118 = vmatpush1.msra.mxu0 0.0
    %119 = vmatprep.subr.mxu0 0.0
    %120 = vmatpush1.msra.mxu0 0.0
    %121 = vmatprep.subr.mxu0 0.0
    %122 = vmatpush1.msra.mxu0 0.0
    %123 = vmatprep.mubr.f32.mxu0 0.0
    %124 = vmatmul.mubr.f32.gmra.mrb[0].mxu0 %v48
    %v125 = vpop.f32.mrb[0].mxu0
    %v126 = vadd.f32 0.0, %v125
    %v127 = vpop.f32.mrb[0].mxu0
    %128 = vmatprep.mubr.f32.mxu0 0.0
    %129 = vmatmul.mubr.f32.gmra.mrb[0].mxu0 %v51
    %v130 = vpop.f32.mrb[0].mxu0
    %v131 = vadd.f32 0.0, %v130
    %v132 = vpop.f32.mrb[0].mxu0
    %133 = vmatprep.mubr.f32.mxu0 0.0
    %134 = vmatmul.mubr.f32.gmra.mrb[0].mxu0 %v54
    %v135 = vpop.f32.mrb[0].mxu0
    %v136 = vadd.f32 0.0, %v135
    %v137 = vpop.f32.mrb[0].mxu0
    %138 = vmatprep.mubr.f32.mxu0 0.0
    %139 = vmatmul.mubr.f32.gmra.mrb[0].mxu0 %v57
    %v140 = vpop.f32.mrb[0].mxu0
    %v141 = vadd.f32 0.0, %v140
    %v142 = vpop.f32.mrb[0].mxu0
    %143 = vdwg.mxu0
    %v144 = vld [vmem:[%s2] sm:$0x1]
    %146 = vset.pattern.permute.xlu0 0
    %147 = vperm.xlu0 %146, %v126
    %v148 = vpop.permute.xlu0 %147
    %151 = vset.pattern.permute.xlu0 0
    %152 = vperm.xlu0 %151, %v131
    %v153 = vpop.permute.xlu0 %152
    %156 = vset.pattern.permute.xlu0 0
    %157 = vperm.xlu0 %156, %v136
    %v158 = vpop.permute.xlu0 %157
    %161 = vset.pattern.permute.xlu0 0
    %162 = vperm.xlu0 %161, %v141
    %v163 = vpop.permute.xlu0 %162
    %v166 = vlaneseq
    %v167 = vshrl.u32 %v166, 7
    %v168 = vsub.s32 0, %v167
    %v169 = vrot.slane %v144, %v168
    %v171 = vmul.f32 %v148, %v169
    %v172 = vmul.f32 %v153, %v169
    %v173 = vmul.f32 %v158, %v169
    %v174 = vmul.f32 %v163, %v169
    %v175 = vld [vmem:[%s3] sm:$0x1]
    %v177 = vlaneseq
    %v178 = vshrl.u32 %v177, 7
    %v179 = vsub.s32 0, %v178
    %v180 = vrot.slane %v175, %v179
    %v182 = vadd.f32 %v171, %v180
    %v183 = vadd.f32 %v172, %v180
    %v184 = vadd.f32 %v173, %v180
    %v185 = vadd.f32 %v174, %v180
    %v186 = vmax.f32 %v182, 0.0
    %v187 = vmax.f32 %v183, 0.0
    %v188 = vmax.f32 %v184, 0.0
    %v189 = vmax.f32 %v185, 0.0
    %190 = vst [vmem:[#allocation2] sm:$0xff] %v186
    %191 = vst [vmem:[#allocation2 + $0x8] sm:$0xff] %v187
    %192 = vst [vmem:[#allocation2 + $0x10] sm:$0xff] %v188
    %193 = vst [vmem:[#allocation2 + $0x18] sm:$0xff] %v189
    %v194 = vld [vmem:[#allocation2] sm:$0xff]
    %v195 = vld [vmem:[#allocation2 + $0x8] sm:$0xff]
    %v196 = vld [vmem:[#allocation2 + $0x10] sm:$0xff]
    %v197 = vld [vmem:[#allocation2 + $0x18] sm:$0xff]
    %v198 = vld [vmem:[#allocation4] sm:$0xff]
    %v199 = vld [vmem:[#allocation4 + $0x8] sm:$0xff]
    %v200 = vld [vmem:[#allocation4 + $0x10] sm:$0xff]
    %v201 = vld [vmem:[#allocation4 + $0x18] sm:$0xff]
    %v202 = vld [vmem:[#allocation4 + $0x20] sm:$0xff]
    %v203 = vld [vmem:[#allocation4 + $0x28] sm:$0xff]
    %v204 = vld [vmem:[#allocation4 + $0x30] sm:$0xff]
    %v205 = vld [vmem:[#allocation4 + $0x38] sm:$0xff]
    %v206 = vld [vmem:[#allocation4 + $0x40] sm:$0xff]
    %v207 = vld [vmem:[#allocation4 + $0x48] sm:$0xff]
    %v208 = vld [vmem:[#allocation4 + $0x50] sm:$0xff]
    %v209 = vld [vmem:[#allocation4 + $0x58] sm:$0xff]
    %v210 = vld [vmem:[#allocation4 + $0x60] sm:$0xff]
    %v211 = vld [vmem:[#allocation4 + $0x68] sm:$0xff]
    %v212 = vld [vmem:[#allocation4 + $0x70] sm:$0xff]
    %v213 = vld [vmem:[#allocation4 + $0x78] sm:$0xff]
    %214 = vmatprep.subr.mxu0 0.0
    %215 = vmatpush1.msra.mxu0 %v198
    %216 = vmatprep.subr.mxu0 0.0
    %217 = vmatpush1.msra.mxu0 %v199
    %218 = vmatprep.subr.mxu0 0.0
    %219 = vmatpush1.msra.mxu0 %v200
    %220 = vmatprep.subr.mxu0 0.0
    %221 = vmatpush1.msra.mxu0 %v201
    %222 = vmatprep.subr.mxu0 0.0
    %223 = vmatpush1.msra.mxu0 %v202
    %224 = vmatprep.subr.mxu0 0.0
    %225 = vmatpush1.msra.mxu0 %v203
    %226 = vmatprep.subr.mxu0 0.0
    %227 = vmatpush1.msra.mxu0 %v204
    %228 = vmatprep.subr.mxu0 0.0
    %229 = vmatpush1.msra.mxu0 %v205
    %230 = vmatprep.subr.mxu0 0.0
    %231 = vmatpush1.msra.mxu0 %v206
    %232 = vmatprep.subr.mxu0 0.0
    %233 = vmatpush1.msra.mxu0 %v207
    %234 = vmatprep.subr.mxu0 0.0
    %235 = vmatpush1.msra.mxu0 %v208
    %236 = vmatprep.subr.mxu0 0.0
    %237 = vmatpush1.msra.mxu0 %v209
    %238 = vmatprep.subr.mxu0 0.0
    %239 = vmatpush1.msra.mxu0 %v210
    %240 = vmatprep.subr.mxu0 0.0
    %241 = vmatpush1.msra.mxu0 %v211
    %242 = vmatprep.subr.mxu0 0.0
    %243 = vmatpush1.msra.mxu0 %v212
    %244 = vmatprep.subr.mxu0 0.0
    %245 = vmatpush1.msra.mxu0 %v213
    %246 = vmatprep.subr.mxu0 0.0
    %247 = vmatpush1.msra.mxu0 0.0
    %248 = vmatprep.subr.mxu0 0.0
    %249 = vmatpush1.msra.mxu0 0.0
    %250 = vmatprep.subr.mxu0 0.0
    %251 = vmatpush1.msra.mxu0 0.0
    %252 = vmatprep.subr.mxu0 0.0
    %253 = vmatpush1.msra.mxu0 0.0
    %254 = vmatprep.subr.mxu0 0.0
    %255 = vmatpush1.msra.mxu0 0.0
    %256 = vmatprep.subr.mxu0 0.0
    %257 = vmatpush1.msra.mxu0 0.0
    %258 = vmatprep.subr.mxu0 0.0
    %259 = vmatpush1.msra.mxu0 0.0
    %260 = vmatprep.subr.mxu0 0.0
    %261 = vmatpush1.msra.mxu0 0.0
    %262 = vmatprep.subr.mxu0 0.0
    %263 = vmatpush1.msra.mxu0 0.0
    %264 = vmatprep.subr.mxu0 0.0
    %265 = vmatpush1.msra.mxu0 0.0
    %266 = vmatprep.subr.mxu0 0.0
    %267 = vmatpush1.msra.mxu0 0.0
    %268 = vmatprep.subr.mxu0 0.0
    %269 = vmatpush1.msra.mxu0 0.0
    %270 = vmatprep.subr.mxu0 0.0
    %271 = vmatpush1.msra.mxu0 0.0
    %272 = vmatprep.subr.mxu0 0.0
    %273 = vmatpush1.msra.mxu0 0.0
    %274 = vmatprep.subr.mxu0 0.0
    %275 = vmatpush1.msra.mxu0 0.0
    %276 = vmatprep.subr.mxu0 0.0
    %277 = vmatpush1.msra.mxu0 0.0
    %278 = vmatprep.mubr.f32.mxu0 0.0
    %279 = vmatmul.mubr.f32.gmra.mrb[0].mxu0 %v194
    %v280 = vpop.f32.mrb[0].mxu0
    %v281 = vadd.f32 0.0, %v280
    %v282 = vpop.f32.mrb[0].mxu0
    %283 = vmatprep.mubr.f32.mxu0 0.0
    %284 = vmatmul.mubr.f32.gmra.mrb[0].mxu0 %v195
    %v285 = vpop.f32.mrb[0].mxu0
    %v286 = vadd.f32 0.0, %v285
    %v287 = vpop.f32.mrb[0].mxu0
    %288 = vmatprep.mubr.f32.mxu0 0.0
    %289 = vmatmul.mubr.f32.gmra.mrb[0].mxu0 %v196
    %v290 = vpop.f32.mrb[0].mxu0
    %v291 = vadd.f32 0.0, %v290
    %v292 = vpop.f32.mrb[0].mxu0
    %293 = vmatprep.mubr.f32.mxu0 0.0
    %294 = vmatmul.mubr.f32.gmra.mrb[0].mxu0 %v197
    %v295 = vpop.f32.mrb[0].mxu0
    %v296 = vadd.f32 0.0, %v295
    %v297 = vpop.f32.mrb[0].mxu0
    %298 = vdwg.mxu0
    %v299 = vld [vmem:[%s5] sm:$0x1]
    %v301 = vlaneseq
    %v302 = vshrl.u32 %v301, 7
    %v303 = vsub.s32 0, %v302
    %v304 = vrot.slane %v299, %v303
    %306 = vmatprep.subr.mxu0 0.0
    %307 = vmatpush1.msra.mxu0 %v281
    %308 = vmatprep.subr.mxu0 0.0
    %309 = vmatpush1.msra.mxu0 %v286
    %310 = vmatprep.subr.mxu0 0.0
    %311 = vmatpush1.msra.mxu0 %v291
    %312 = vmatprep.subr.mxu0 0.0
    %313 = vmatpush1.msra.mxu0 %v296
    %314 = vmatprep.subr.mxu0 0.0
    %315 = vmatpush1.msra.mxu0 0.0
    %316 = vmatprep.subr.mxu0 0.0
    %317 = vmatpush1.msra.mxu0 0.0
    %318 = vmatprep.subr.mxu0 0.0
    %319 = vmatpush1.msra.mxu0 0.0
    %320 = vmatprep.subr.mxu0 0.0
    %321 = vmatpush1.msra.mxu0 0.0
    %322 = vmatprep.subr.mxu0 0.0
    %323 = vmatpush1.msra.mxu0 0.0
    %324 = vmatprep.subr.mxu0 0.0
    %325 = vmatpush1.msra.mxu0 0.0
    %326 = vmatprep.subr.mxu0 0.0
    %327 = vmatpush1.msra.mxu0 0.0
    %328 = vmatprep.subr.mxu0 0.0
    %329 = vmatpush1.msra.mxu0 0.0
    %330 = vmatprep.subr.mxu0 0.0
    %331 = vmatpush1.msra.mxu0 0.0
    %332 = vmatprep.subr.mxu0 0.0
    %333 = vmatpush1.msra.mxu0 0.0
    %334 = vmatprep.subr.mxu0 0.0
    %335 = vmatpush1.msra.mxu0 0.0
    %336 = vmatprep.subr.mxu0 0.0
    %337 = vmatpush1.msra.mxu0 0.0
    %338 = vmatprep.subr.mxu0 0.0
    %339 = vmatpush1.msra.mxu0 0.0
    %340 = vmatprep.subr.mxu0 0.0
    %341 = vmatpush1.msra.mxu0 0.0
    %342 = vmatprep.subr.mxu0 0.0
    %343 = vmatpush1.msra.mxu0 0.0
    %344 = vmatprep.subr.mxu0 0.0
    %345 = vmatpush1.msra.mxu0 0.0
    %346 = vmatprep.subr.mxu0 0.0
    %347 = vmatpush1.msra.mxu0 0.0
    %348 = vmatprep.subr.mxu0 0.0
    %349 = vmatpush1.msra.mxu0 0.0
    %350 = vmatprep.subr.mxu0 0.0
    %351 = vmatpush1.msra.mxu0 0.0
    %352 = vmatprep.subr.mxu0 0.0
    %353 = vmatpush1.msra.mxu0 0.0
    %354 = vmatprep.subr.mxu0 0.0
    %355 = vmatpush1.msra.mxu0 0.0
    %356 = vmatprep.subr.mxu0 0.0
    %357 = vmatpush1.msra.mxu0 0.0
    %358 = vmatprep.subr.mxu0 0.0
    %359 = vmatpush1.msra.mxu0 0.0
    %360 = vmatprep.subr.mxu0 0.0
    %361 = vmatpush1.msra.mxu0 0.0
    %362 = vmatprep.subr.mxu0 0.0
    %363 = vmatpush1.msra.mxu0 0.0
    %364 = vmatprep.subr.mxu0 0.0
    %365 = vmatpush1.msra.mxu0 0.0
    %366 = vmatprep.subr.mxu0 0.0
    %367 = vmatpush1.msra.mxu0 0.0
    %368 = vmatprep.subr.mxu0 0.0
    %369 = vmatpush1.msra.mxu0 0.0
    %370 = vmatprep.mubr.f32.mxu0 0.0
    %371 = vmatmul.mubr.f32.gmra.mrb[0].mxu0 %v48
    %v372 = vpop.f32.mrb[0].mxu0
    %v373 = vadd.f32 %v304, %v372
    %v374 = vpop.f32.mrb[0].mxu0
    %375 = vmatprep.mubr.f32.mxu0 0.0
    %376 = vmatmul.mubr.f32.gmra.mrb[0].mxu0 %v51
    %v377 = vpop.f32.mrb[0].mxu0
    %v378 = vadd.f32 %v304, %v377
    %v379 = vpop.f32.mrb[0].mxu0
    %380 = vmatprep.mubr.f32.mxu0 0.0
    %381 = vmatmul.mubr.f32.gmra.mrb[0].mxu0 %v54
    %v382 = vpop.f32.mrb[0].mxu0
    %v383 = vadd.f32 %v304, %v382
    %v384 = vpop.f32.mrb[0].mxu0
    %385 = vmatprep.mubr.f32.mxu0 0.0
    %386 = vmatmul.mubr.f32.gmra.mrb[0].mxu0 %v57
    %v387 = vpop.f32.mrb[0].mxu0
    %v388 = vadd.f32 %v304, %v387
    %v389 = vpop.f32.mrb[0].mxu0
    %390 = vdwg.mxu0
    %v391 = vmax.f32 %v373, 0.0
    %v392 = vmax.f32 %v378, 0.0
    %v393 = vmax.f32 %v383, 0.0
    %v394 = vmax.f32 %v388, 0.0
    %395 = vst [vmem:[#allocation3] sm:$0xff] %v391
    %396 = vst [vmem:[#allocation3 + $0x8] sm:$0xff] %v392
    %397 = vst [vmem:[#allocation3 + $0x10] sm:$0xff] %v393
    %398 = vst [vmem:[#allocation3 + $0x18] sm:$0xff] %v394
    %v399 = vld [vmem:[#allocation3] sm:$0xff]
    %v400 = vld [vmem:[#allocation3 + $0x8] sm:$0xff]
    %v401 = vld [vmem:[#allocation3 + $0x10] sm:$0xff]
    %v402 = vld [vmem:[#allocation3 + $0x18] sm:$0xff]
    %s403 = scalar_lea.vmem [#allocation4], 128
    %v404 = vld [vmem:[%s403] sm:$0xff]
    %v405 = vld [vmem:[%s403 + $0x8] sm:$0xff]
    %v406 = vld [vmem:[%s403 + $0x10] sm:$0xff]
    %v407 = vld [vmem:[%s403 + $0x18] sm:$0xff]
    %v408 = vld [vmem:[%s403 + $0x20] sm:$0xff]
    %v409 = vld [vmem:[%s403 + $0x28] sm:$0xff]
    %v410 = vld [vmem:[%s403 + $0x30] sm:$0xff]
    %v411 = vld [vmem:[%s403 + $0x38] sm:$0xff]
    %v412 = vld [vmem:[%s403 + $0x40] sm:$0xff]
    %v413 = vld [vmem:[%s403 + $0x48] sm:$0xff]
    %v414 = vld [vmem:[%s403 + $0x50] sm:$0xff]
    %v415 = vld [vmem:[%s403 + $0x58] sm:$0xff]
    %v416 = vld [vmem:[%s403 + $0x60] sm:$0xff]
    %v417 = vld [vmem:[%s403 + $0x68] sm:$0xff]
    %v418 = vld [vmem:[%s403 + $0x70] sm:$0xff]
    %v419 = vld [vmem:[%s403 + $0x78] sm:$0xff]
    %420 = vmatprep.subr.mxu0 0.0
    %421 = vmatpush1.msra.mxu0 %v404
    %422 = vmatprep.subr.mxu0 0.0
    %423 = vmatpush1.msra.mxu0 %v405
    %424 = vmatprep.subr.mxu0 0.0
    %425 = vmatpush1.msra.mxu0 %v406
    %426 = vmatprep.subr.mxu0 0.0
    %427 = vmatpush1.msra.mxu0 %v407
    %428 = vmatprep.subr.mxu0 0.0
    %429 = vmatpush1.msra.mxu0 %v408
    %430 = vmatprep.subr.mxu0 0.0
    %431 = vmatpush1.msra.mxu0 %v409
    %432 = vmatprep.subr.mxu0 0.0
    %433 = vmatpush1.msra.mxu0 %v410
    %434 = vmatprep.subr.mxu0 0.0
    %435 = vmatpush1.msra.mxu0 %v411
    %436 = vmatprep.subr.mxu0 0.0
    %437 = vmatpush1.msra.mxu0 %v412
    %438 = vmatprep.subr.mxu0 0.0
    %439 = vmatpush1.msra.mxu0 %v413
    %440 = vmatprep.subr.mxu0 0.0
    %441 = vmatpush1.msra.mxu0 %v414
    %442 = vmatprep.subr.mxu0 0.0
    %443 = vmatpush1.msra.mxu0 %v415
    %444 = vmatprep.subr.mxu0 0.0
    %445 = vmatpush1.msra.mxu0 %v416
    %446 = vmatprep.subr.mxu0 0.0
    %447 = vmatpush1.msra.mxu0 %v417
    %448 = vmatprep.subr.mxu0 0.0
    %449 = vmatpush1.msra.mxu0 %v418
    %450 = vmatprep.subr.mxu0 0.0
    %451 = vmatpush1.msra.mxu0 %v419
    %452 = vmatprep.subr.mxu0 0.0
    %453 = vmatpush1.msra.mxu0 0.0
    %454 = vmatprep.subr.mxu0 0.0
    %455 = vmatpush1.msra.mxu0 0.0
    %456 = vmatprep.subr.mxu0 0.0
    %457 = vmatpush1.msra.mxu0 0.0
    %458 = vmatprep.subr.mxu0 0.0
    %459 = vmatpush1.msra.mxu0 0.0
    %460 = vmatprep.subr.mxu0 0.0
    %461 = vmatpush1.msra.mxu0 0.0
    %462 = vmatprep.subr.mxu0 0.0
    %463 = vmatpush1.msra.mxu0 0.0
    %464 = vmatprep.subr.mxu0 0.0
    %465 = vmatpush1.msra.mxu0 0.0
    %466 = vmatprep.subr.mxu0 0.0
    %467 = vmatpush1.msra.mxu0 0.0
    %468 = vmatprep.subr.mxu0 0.0
    %469 = vmatpush1.msra.mxu0 0.0
    %470 = vmatprep.subr.mxu0 0.0
    %471 = vmatpush1.msra.mxu0 0.0
    %472 = vmatprep.subr.mxu0 0.0
    %473 = vmatpush1.msra.mxu0 0.0
    %474 = vmatprep.subr.mxu0 0.0
    %475 = vmatpush1.msra.mxu0 0.0
    %476 = vmatprep.subr.mxu0 0.0
    %477 = vmatpush1.msra.mxu0 0.0
    %478 = vmatprep.subr.mxu0 0.0
    %479 = vmatpush1.msra.mxu0 0.0
    %480 = vmatprep.subr.mxu0 0.0
    %481 = vmatpush1.msra.mxu0 0.0
    %482 = vmatprep.subr.mxu0 0.0
    %483 = vmatpush1.msra.mxu0 0.0
    %484 = vmatprep.mubr.f32.mxu0 0.0
    %485 = vmatmul.mubr.f32.gmra.mrb[0].mxu0 %v399
    %v486 = vpop.f32.mrb[0].mxu0
    %v487 = vadd.f32 0.0, %v486
    %v488 = vpop.f32.mrb[0].mxu0
    %489 = vmatprep.mubr.f32.mxu0 0.0
    %490 = vmatmul.mubr.f32.gmra.mrb[0].mxu0 %v400
    %v491 = vpop.f32.mrb[0].mxu0
    %v492 = vadd.f32 0.0, %v491
    %v493 = vpop.f32.mrb[0].mxu0
    %494 = vmatprep.mubr.f32.mxu0 0.0
    %495 = vmatmul.mubr.f32.gmra.mrb[0].mxu0 %v401
    %v496 = vpop.f32.mrb[0].mxu0
    %v497 = vadd.f32 0.0, %v496
    %v498 = vpop.f32.mrb[0].mxu0
    %499 = vmatprep.mubr.f32.mxu0 0.0
    %500 = vmatmul.mubr.f32.gmra.mrb[0].mxu0 %v402
    %v501 = vpop.f32.mrb[0].mxu0
    %v502 = vadd.f32 0.0, %v501
    %v503 = vpop.f32.mrb[0].mxu0
    %504 = vdwg.mxu0
    %s505 = scalar_lea.vmem %s5, 1
    %v506 = vld [vmem:[%s505] sm:$0x1]
    %v508 = vlaneseq
    %v509 = vshrl.u32 %v508, 7
    %v510 = vsub.s32 0, %v509
    %v511 = vrot.slane %v506, %v510
    %513 = vmatprep.subr.mxu0 0.0
    %514 = vmatpush1.msra.mxu0 %v487
    %515 = vmatprep.subr.mxu0 0.0
    %516 = vmatpush1.msra.mxu0 %v492
    %517 = vmatprep.subr.mxu0 0.0
    %518 = vmatpush1.msra.mxu0 %v497
    %519 = vmatprep.subr.mxu0 0.0
    %520 = vmatpush1.msra.mxu0 %v502
    %521 = vmatprep.subr.mxu0 0.0
    %522 = vmatpush1.msra.mxu0 0.0
    %523 = vmatprep.subr.mxu0 0.0
    %524 = vmatpush1.msra.mxu0 0.0
    %525 = vmatprep.subr.mxu0 0.0
    %526 = vmatpush1.msra.mxu0 0.0
    %527 = vmatprep.subr.mxu0 0.0
    %528 = vmatpush1.msra.mxu0 0.0
    %529 = vmatprep.subr.mxu0 0.0
    %530 = vmatpush1.msra.mxu0 0.0
    %531 = vmatprep.subr.mxu0 0.0
    %532 = vmatpush1.msra.mxu0 0.0
    %533 = vmatprep.subr.mxu0 0.0
    %534 = vmatpush1.msra.mxu0 0.0
    %535 = vmatprep.subr.mxu0 0.0
    %536 = vmatpush1.msra.mxu0 0.0
    %537 = vmatprep.subr.mxu0 0.0
    %538 = vmatpush1.msra.mxu0 0.0
    %539 = vmatprep.subr.mxu0 0.0
    %540 = vmatpush1.msra.mxu0 0.0
    %541 = vmatprep.subr.mxu0 0.0
    %542 = vmatpush1.msra.mxu0 0.0
    %543 = vmatprep.subr.mxu0 0.0
    %544 = vmatpush1.msra.mxu0 0.0
    %545 = vmatprep.subr.mxu0 0.0
    %546 = vmatpush1.msra.mxu0 0.0
    %547 = vmatprep.subr.mxu0 0.0
    %548 = vmatpush1.msra.mxu0 0.0
    %549 = vmatprep.subr.mxu0 0.0
    %550 = vmatpush1.msra.mxu0 0.0
    %551 = vmatprep.subr.mxu0 0.0
    %552 = vmatpush1.msra.mxu0 0.0
    %553 = vmatprep.subr.mxu0 0.0
    %554 = vmatpush1.msra.mxu0 0.0
    %555 = vmatprep.subr.mxu0 0.0
    %556 = vmatpush1.msra.mxu0 0.0
    %557 = vmatprep.subr.mxu0 0.0
    %558 = vmatpush1.msra.mxu0 0.0
    %559 = vmatprep.subr.mxu0 0.0
    %560 = vmatpush1.msra.mxu0 0.0
    %561 = vmatprep.subr.mxu0 0.0
    %562 = vmatpush1.msra.mxu0 0.0
    %563 = vmatprep.subr.mxu0 0.0
    %564 = vmatpush1.msra.mxu0 0.0
    %565 = vmatprep.subr.mxu0 0.0
    %566 = vmatpush1.msra.mxu0 0.0
    %567 = vmatprep.subr.mxu0 0.0
    %568 = vmatpush1.msra.mxu0 0.0
    %569 = vmatprep.subr.mxu0 0.0
    %570 = vmatpush1.msra.mxu0 0.0
    %571 = vmatprep.subr.mxu0 0.0
    %572 = vmatpush1.msra.mxu0 0.0
    %573 = vmatprep.subr.mxu0 0.0
    %574 = vmatpush1.msra.mxu0 0.0
    %575 = vmatprep.subr.mxu0 0.0
    %576 = vmatpush1.msra.mxu0 0.0
    %577 = vmatprep.mubr.f32.mxu0 0.0
    %578 = vmatmul.mubr.f32.gmra.mrb[0].mxu0 %v48
    %v579 = vpop.f32.mrb[0].mxu0
    %v580 = vadd.f32 %v511, %v579
    %v581 = vpop.f32.mrb[0].mxu0
    %582 = vmatprep.mubr.f32.mxu0 0.0
    %583 = vmatmul.mubr.f32.gmra.mrb[0].mxu0 %v51
    %v584 = vpop.f32.mrb[0].mxu0
    %v585 = vadd.f32 %v511, %v584
    %v586 = vpop.f32.mrb[0].mxu0
    %587 = vmatprep.mubr.f32.mxu0 0.0
    %588 = vmatmul.mubr.f32.gmra.mrb[0].mxu0 %v54
    %v589 = vpop.f32.mrb[0].mxu0
    %v590 = vadd.f32 %v511, %v589
    %v591 = vpop.f32.mrb[0].mxu0
    %592 = vmatprep.mubr.f32.mxu0 0.0
    %593 = vmatmul.mubr.f32.gmra.mrb[0].mxu0 %v57
    %v594 = vpop.f32.mrb[0].mxu0
    %v595 = vadd.f32 %v511, %v594
    %v596 = vpop.f32.mrb[0].mxu0
    %597 = vdwg.mxu0
    %v598 = vmax.f32 %v580, 0.0
    %v599 = vmax.f32 %v585, 0.0
    %v600 = vmax.f32 %v590, 0.0
    %v601 = vmax.f32 %v595, 0.0
    %602 = vst [vmem:[#allocation2] sm:$0xff] %v598
    %603 = vst [vmem:[#allocation2 + $0x8] sm:$0xff] %v599
    %604 = vst [vmem:[#allocation2 + $0x10] sm:$0xff] %v600
    %605 = vst [vmem:[#allocation2 + $0x18] sm:$0xff] %v601
    %v606 = vld [vmem:[#allocation2] sm:$0xff]
    %v607 = vld [vmem:[#allocation2 + $0x8] sm:$0xff]
    %v608 = vld [vmem:[#allocation2 + $0x10] sm:$0xff]
    %v609 = vld [vmem:[#allocation2 + $0x18] sm:$0xff]
    %s610 = scalar_lea.vmem [#allocation4], 256
    %v611 = vld [vmem:[%s610] sm:$0xff]
    %v612 = vld [vmem:[%s610 + $0x8] sm:$0xff]
    %v613 = vld [vmem:[%s610 + $0x10] sm:$0xff]
    %v614 = vld [vmem:[%s610 + $0x18] sm:$0xff]
    %v615 = vld [vmem:[%s610 + $0x20] sm:$0xff]
    %v616 = vld [vmem:[%s610 + $0x28] sm:$0xff]
    %v617 = vld [vmem:[%s610 + $0x30] sm:$0xff]
    %v618 = vld [vmem:[%s610 + $0x38] sm:$0xff]
    %v619 = vld [vmem:[%s610 + $0x40] sm:$0xff]
    %v620 = vld [vmem:[%s610 + $0x48] sm:$0xff]
    %v621 = vld [vmem:[%s610 + $0x50] sm:$0xff]
    %v622 = vld [vmem:[%s610 + $0x58] sm:$0xff]
    %v623 = vld [vmem:[%s610 + $0x60] sm:$0xff]
    %v624 = vld [vmem:[%s610 + $0x68] sm:$0xff]
    %v625 = vld [vmem:[%s610 + $0x70] sm:$0xff]
    %v626 = vld [vmem:[%s610 + $0x78] sm:$0xff]
    %627 = vmatprep.subr.mxu0 0.0
    %628 = vmatpush1.msra.mxu0 %v611
    %629 = vmatprep.subr.mxu0 0.0
    %630 = vmatpush1.msra.mxu0 %v612
    %631 = vmatprep.subr.mxu0 0.0
    %632 = vmatpush1.msra.mxu0 %v613
    %633 = vmatprep.subr.mxu0 0.0
    %634 = vmatpush1.msra.mxu0 %v614
    %635 = vmatprep.subr.mxu0 0.0
    %636 = vmatpush1.msra.mxu0 %v615
    %637 = vmatprep.subr.mxu0 0.0
    %638 = vmatpush1.msra.mxu0 %v616
    %639 = vmatprep.subr.mxu0 0.0
    %640 = vmatpush1.msra.mxu0 %v617
    %641 = vmatprep.subr.mxu0 0.0
    %642 = vmatpush1.msra.mxu0 %v618
    %643 = vmatprep.subr.mxu0 0.0
    %644 = vmatpush1.msra.mxu0 %v619
    %645 = vmatprep.subr.mxu0 0.0
    %646 = vmatpush1.msra.mxu0 %v620
    %647 = vmatprep.subr.mxu0 0.0
    %648 = vmatpush1.msra.mxu0 %v621
    %649 = vmatprep.subr.mxu0 0.0
    %650 = vmatpush1.msra.mxu0 %v622
    %651 = vmatprep.subr.mxu0 0.0
    %652 = vmatpush1.msra.mxu0 %v623
    %653 = vmatprep.subr.mxu0 0.0
    %654 = vmatpush1.msra.mxu0 %v624
    %655 = vmatprep.subr.mxu0 0.0
    %656 = vmatpush1.msra.mxu0 %v625
    %657 = vmatprep.subr.mxu0 0.0
    %658 = vmatpush1.msra.mxu0 %v626
    %659 = vmatprep.subr.mxu0 0.0
    %660 = vmatpush1.msra.mxu0 0.0
    %661 = vmatprep.subr.mxu0 0.0
    %662 = vmatpush1.msra.mxu0 0.0
    %663 = vmatprep.subr.mxu0 0.0
    %664 = vmatpush1.msra.mxu0 0.0
    %665 = vmatprep.subr.mxu0 0.0
    %666 = vmatpush1.msra.mxu0 0.0
    %667 = vmatprep.subr.mxu0 0.0
    %668 = vmatpush1.msra.mxu0 0.0
    %669 = vmatprep.subr.mxu0 0.0
    %670 = vmatpush1.msra.mxu0 0.0
    %671 = vmatprep.subr.mxu0 0.0
    %672 = vmatpush1.msra.mxu0 0.0
    %673 = vmatprep.subr.mxu0 0.0
    %674 = vmatpush1.msra.mxu0 0.0
    %675 = vmatprep.subr.mxu0 0.0
    %676 = vmatpush1.msra.mxu0 0.0
    %677 = vmatprep.subr.mxu0 0.0
    %678 = vmatpush1.msra.mxu0 0.0
    %679 = vmatprep.subr.mxu0 0.0
    %680 = vmatpush1.msra.mxu0 0.0
    %681 = vmatprep.subr.mxu0 0.0
    %682 = vmatpush1.msra.mxu0 0.0
    %683 = vmatprep.subr.mxu0 0.0
    %684 = vmatpush1.msra.mxu0 0.0
    %685 = vmatprep.subr.mxu0 0.0
    %686 = vmatpush1.msra.mxu0 0.0
    %687 = vmatprep.subr.mxu0 0.0
    %688 = vmatpush1.msra.mxu0 0.0
    %689 = vmatprep.subr.mxu0 0.0
    %690 = vmatpush1.msra.mxu0 0.0
    %691 = vmatprep.mubr.f32.mxu0 0.0
    %692 = vmatmul.mubr.f32.gmra.mrb[0].mxu0 %v606
    %v693 = vpop.f32.mrb[0].mxu0
    %v694 = vadd.f32 0.0, %v693
    %v695 = vpop.f32.mrb[0].mxu0
    %696 = vmatprep.mubr.f32.mxu0 0.0
    %697 = vmatmul.mubr.f32.gmra.mrb[0].mxu0 %v607
    %v698 = vpop.f32.mrb[0].mxu0
    %v699 = vadd.f32 0.0, %v698
    %v700 = vpop.f32.mrb[0].mxu0
    %701 = vmatprep.mubr.f32.mxu0 0.0
    %702 = vmatmul.mubr.f32.gmra.mrb[0].mxu0 %v608
    %v703 = vpop.f32.mrb[0].mxu0
    %v704 = vadd.f32 0.0, %v703
    %v705 = vpop.f32.mrb[0].mxu0
    %706 = vmatprep.mubr.f32.mxu0 0.0
    %707 = vmatmul.mubr.f32.gmra.mrb[0].mxu0 %v609
    %v708 = vpop.f32.mrb[0].mxu0
    %v709 = vadd.f32 0.0, %v708
    %v710 = vpop.f32.mrb[0].mxu0
    %711 = vdwg.mxu0
    %s712 = scalar_lea.vmem %s5, 2
    %v713 = vld [vmem:[%s712] sm:$0x1]
    %v715 = vlaneseq
    %v716 = vshrl.u32 %v715, 7
    %v717 = vsub.s32 0, %v716
    %v718 = vrot.slane %v713, %v717
    %720 = vmatprep.subr.mxu0 0.0
    %721 = vmatpush1.msra.mxu0 %v694
    %722 = vmatprep.subr.mxu0 0.0
    %723 = vmatpush1.msra.mxu0 %v699
    %724 = vmatprep.subr.mxu0 0.0
    %725 = vmatpush1.msra.mxu0 %v704
    %726 = vmatprep.subr.mxu0 0.0
    %727 = vmatpush1.msra.mxu0 %v709
    %728 = vmatprep.subr.mxu0 0.0
    %729 = vmatpush1.msra.mxu0 0.0
    %730 = vmatprep.subr.mxu0 0.0
    %731 = vmatpush1.msra.mxu0 0.0
    %732 = vmatprep.subr.mxu0 0.0
    %733 = vmatpush1.msra.mxu0 0.0
    %734 = vmatprep.subr.mxu0 0.0
    %735 = vmatpush1.msra.mxu0 0.0
    %736 = vmatprep.subr.mxu0 0.0
    %737 = vmatpush1.msra.mxu0 0.0
    %738 = vmatprep.subr.mxu0 0.0
    %739 = vmatpush1.msra.mxu0 0.0
    %740 = vmatprep.subr.mxu0 0.0
    %741 = vmatpush1.msra.mxu0 0.0
    %742 = vmatprep.subr.mxu0 0.0
    %743 = vmatpush1.msra.mxu0 0.0
    %744 = vmatprep.subr.mxu0 0.0
    %745 = vmatpush1.msra.mxu0 0.0
    %746 = vmatprep.subr.mxu0 0.0
    %747 = vmatpush1.msra.mxu0 0.0
    %748 = vmatprep.subr.mxu0 0.0
    %749 = vmatpush1.msra.mxu0 0.0
    %750 = vmatprep.subr.mxu0 0.0
    %751 = vmatpush1.msra.mxu0 0.0
    %752 = vmatprep.subr.mxu0 0.0
    %753 = vmatpush1.msra.mxu0 0.0
    %754 = vmatprep.subr.mxu0 0.0
    %755 = vmatpush1.msra.mxu0 0.0
    %756 = vmatprep.subr.mxu0 0.0
    %757 = vmatpush1.msra.mxu0 0.0
    %758 = vmatprep.subr.mxu0 0.0
    %759 = vmatpush1.msra.mxu0 0.0
    %760 = vmatprep.subr.mxu0 0.0
    %761 = vmatpush1.msra.mxu0 0.0
    %762 = vmatprep.subr.mxu0 0.0
    %763 = vmatpush1.msra.mxu0 0.0
    %764 = vmatprep.subr.mxu0 0.0
    %765 = vmatpush1.msra.mxu0 0.0
    %766 = vmatprep.subr.mxu0 0.0
    %767 = vmatpush1.msra.mxu0 0.0
    %768 = vmatprep.subr.mxu0 0.0
    %769 = vmatpush1.msra.mxu0 0.0
    %770 = vmatprep.subr.mxu0 0.0
    %771 = vmatpush1.msra.mxu0 0.0
    %772 = vmatprep.subr.mxu0 0.0
    %773 = vmatpush1.msra.mxu0 0.0
    %774 = vmatprep.subr.mxu0 0.0
    %775 = vmatpush1.msra.mxu0 0.0
    %776 = vmatprep.subr.mxu0 0.0
    %777 = vmatpush1.msra.mxu0 0.0
    %778 = vmatprep.subr.mxu0 0.0
    %779 = vmatpush1.msra.mxu0 0.0
    %780 = vmatprep.subr.mxu0 0.0
    %781 = vmatpush1.msra.mxu0 0.0
    %782 = vmatprep.subr.mxu0 0.0
    %783 = vmatpush1.msra.mxu0 0.0
    %784 = vmatprep.mubr.f32.mxu0 0.0
    %785 = vmatmul.mubr.f32.gmra.mrb[0].mxu0 %v48
    %v786 = vpop.f32.mrb[0].mxu0
    %v787 = vadd.f32 %v718, %v786
    %v788 = vpop.f32.mrb[0].mxu0
    %789 = vmatprep.mubr.f32.mxu0 0.0
    %790 = vmatmul.mubr.f32.gmra.mrb[0].mxu0 %v51
    %v791 = vpop.f32.mrb[0].mxu0
    %v792 = vadd.f32 %v718, %v791
    %v793 = vpop.f32.mrb[0].mxu0
    %794 = vmatprep.mubr.f32.mxu0 0.0
    %795 = vmatmul.mubr.f32.gmra.mrb[0].mxu0 %v54
    %v796 = vpop.f32.mrb[0].mxu0
    %v797 = vadd.f32 %v718, %v796
    %v798 = vpop.f32.mrb[0].mxu0
    %799 = vmatprep.mubr.f32.mxu0 0.0
    %800 = vmatmul.mubr.f32.gmra.mrb[0].mxu0 %v57
    %v801 = vpop.f32.mrb[0].mxu0
    %v802 = vadd.f32 %v718, %v801
    %v803 = vpop.f32.mrb[0].mxu0
    %804 = vdwg.mxu0
    %805 = vst [vmem:[#allocation7] sm:$0xff] %v787
    %806 = vst [vmem:[#allocation7 + $0x8] sm:$0xff] %v792
    %807 = vst [vmem:[#allocation7 + $0x10] sm:$0xff] %v797
    %808 = vst [vmem:[#allocation7 + $0x18] sm:$0xff] %v802
    // Predicated region
    $region30: #{tpu_custom_call.1} parent=1 // pred_check
      _
    $region31: #{tpu_custom_call.1} parent=1 // pred_check_branch
      %810 = sbr.rel (0) target = $region33
    $region32: #{tpu_custom_call.1} parent=1 // pred_region
      %s812 = ssub.s32 512, 512
      %813 = vsyncadd [#allocation6], %s812
      %s814 = sshll.u32 [#allocation7], 4
      %s815 = int_to_ptr.vmem [resolvable:$true] %s814
      %820 = dma.vmem_to_hbm [thread:$0]  %s815, 512, %s6, [#allocation6], 128, 128, 8
    $region33: #{tpu_custom_call.1} parent=1 // pred_fallthru
      _
    // Predicated region
    $region34: #{tpu_custom_call.1} parent=1 // pred_check
      _
    $region35: #{tpu_custom_call.1} parent=1 // pred_check_branch
      %822 = sbr.rel (0) target = $region37
    $region36: #{tpu_custom_call.1} parent=1 // pred_region
      %823 = dma.done [#allocation6], 512
    $region37: #{tpu_custom_call.1} parent=1 // pred_fallthru
      _
    %824 = vsyncpa [#allocation5], 1
    %825 = vsyncpa [#allocation6], 1

</llo_original>
